<compile_context>
chip_gen: v7x
topology: tpu7x:2x2x1
jax: 0.10.0
libtpu: 0.0.40
codegen_flags: <defaults>
</compile_context>

<pallas_src>
import jax
import jax.numpy as jnp
from jax.experimental import pallas as pl
from jax.experimental.pallas import tpu as pltpu

TEXT_IN = 128        # text_feat dim (dim_proj: Linear(128, 256))
EMBED = 256          # CrossModalAttention embed dim == audio_feat dim
TEXT_HID = 128       # text_hidden_dims  (TEXT_HID + AUDIO_HID == 384)
AUDIO_HID = 256      # audio_hidden_dims
CONCAT = TEXT_HID + AUDIO_HID   # 384
NUM_CLASSES = 8
OUT_PAD = 128        # lane-dense padded output width (>= NUM_CLASSES)
LN_EPS = 1e-5


def fusion_kernel(text_ref, audio_ref,
                  w_t_ref, w_a_ref, b_ref,
                  ln_g_ref, ln_b_ref,
                  w_f_ref,
                  out_ref):
    # ---- modal_attn Linear(384 -> 384) with the attention GEMM pre-folded ----
    # Host-side fold (f32):  W_a = (W_v @ W_o) @ W_ma[128:],
    #                        b   = (b_v @ W_o + b_o) @ W_ma[128:] + b_ma
    # (dim_proj / q / k never affect the output: softmax over one key == 1.)
    h = (jnp.dot(text_ref[...], w_t_ref[...], preferred_element_type=jnp.float32)
         + jnp.dot(audio_ref[...], w_a_ref[...], preferred_element_type=jnp.float32)
         + b_ref[...])                                               # [TB, 384] f32

    # ---- LayerNorm(384), single-pass stats, f32 ----
    # Padded batch rows (if any) give var == 0 -> rsqrt(eps) ~ 316: finite, and
    # those rows are sliced off in the wrapper, so this is benign by design.
    m = jnp.mean(h, axis=-1, keepdims=True)
    m2 = jnp.mean(h * h, axis=-1, keepdims=True)
    var = m2 - m * m
    h_ln = (h - m) * jax.lax.rsqrt(var + LN_EPS) * ln_g_ref[...] + ln_b_ref[...]
    x = jax.nn.sigmoid(h_ln)

    # ---- fc_final: Linear(384 -> num_classes, bias=False) + ReLU ----
    # w_f zero-padded to 128 output lanes for unmasked, lane-dense stores;
    # output stored in bf16 to halve the (16x over-padded) writeback.
    y = jnp.dot(x.astype(jnp.bfloat16), w_f_ref[...],
                preferred_element_type=jnp.float32)                  # [TB, 128] f32
    out_ref[...] = jnp.maximum(y, 0.0).astype(out_ref.dtype)


def init_params(key):
    """Deterministic synthetic parameters (shapes match the PyTorch module)."""
    ks = jax.random.split(key, 12)
    s = 0.05

    def nrm(k, shape):
        return (s * jax.random.normal(k, shape)).astype(jnp.float32)

    return {
        # dim_proj: nn.Linear(128, 256)      (dead path, kept for the reference)
        "w_dp": nrm(ks[0], (TEXT_IN, EMBED)),
        "b_dp": nrm(ks[1], (1, EMBED)),
        # MultiheadAttention(256, 1): in_proj (q/k/v) + out_proj
        "w_q": nrm(ks[2], (EMBED, EMBED)),
        "b_q": nrm(ks[3], (1, EMBED)),
        "w_k": nrm(ks[4], (EMBED, EMBED)),
        "b_k": nrm(ks[5], (1, EMBED)),
        "w_v": nrm(ks[6], (EMBED, EMBED)),
        "b_v": nrm(ks[7], (1, EMBED)),
        "w_o": nrm(ks[8], (EMBED, EMBED)),
        "b_o": nrm(ks[9], (1, EMBED)),
        # modal_attn: Linear(384, 384) + LayerNorm(384)
        "w_ma": nrm(ks[10], (CONCAT, CONCAT)),
        "b_ma": jnp.zeros((1, CONCAT), jnp.float32),
        "ln_g": jnp.ones((1, CONCAT), jnp.float32),
        "ln_b": jnp.zeros((1, CONCAT), jnp.float32),
        # fc_final: Linear(384, num_classes, bias=False)
        "w_f": nrm(ks[11], (CONCAT, NUM_CLASSES)),
    }


def prepare_params(params):
    """Host-side fold / slice / pad / cast of PyTorch-shaped params -> kernel args.

    All folds are done in f32 and cast to bf16 exactly once at the end, to avoid
    compounding bf16 rounding relative to the unfolded path.
    """
    bf = jnp.bfloat16
    w_ma_t = params["w_ma"][:TEXT_HID, :]                        # [128, 384]
    w_ma_a = params["w_ma"][TEXT_HID:, :]                        # [256, 384]
    # attention (softmax weight == 1) folded into the audio half of modal_attn:
    w_vo = params["w_v"] @ params["w_o"]                         # [256, 256] f32
    b_vo = params["b_v"] @ params["w_o"] + params["b_o"]         # [1, 256]   f32
    w_a = w_vo @ w_ma_a                                          # [256, 384] f32
    b = b_vo @ w_ma_a + params["b_ma"]                           # [1, 384]   f32
    w_f_pad = jnp.zeros((CONCAT, OUT_PAD), jnp.float32)
    w_f_pad = w_f_pad.at[:, :NUM_CLASSES].set(params["w_f"])     # [384, 128]
    return (w_ma_t.astype(bf), w_a.astype(bf), b,
            params["ln_g"], params["ln_b"],
            w_f_pad.astype(bf))


def _round_up(x, m):
    return (x + m - 1) // m * m


def _choose_tb(B, block_b):
    """Pick a batch tile: divides B when possible (no input padding), 16-row
    aligned when possible (bf16 sublane packing), and small enough that the
    grid has >= 2 steps for mid/large batches (v7x dual TensorCore)."""
    if B < 32:
        return B  # one full-array block; legal for any B, no padding needed
    half = _round_up(max(B // 2, 16), 16)
    cap = min(block_b, half)
    for align in (16, 8):
        tb = (cap // align) * align
        while tb >= align:
            if B % tb == 0:
                return tb
            tb -= align
    if B <= block_b:
        return B      # ragged mid-size batch: single full block, no padding
    return cap        # large ragged batch with no aligned divisor: pad (rare)


def fusion_forward(text_feat, audio_feat, kernel_params, *, block_b=512):
    B = text_feat.shape[0]
    TB = _choose_tb(B, block_b)
    Bp = _round_up(B, TB)
    if Bp != B:
        # Only reached when no 8/16-aligned divisor tile exists for a large
        # ragged batch; costs one extra copy of the inputs.
        text_feat = jnp.pad(text_feat, ((0, Bp - B), (0, 0)))
        audio_feat = jnp.pad(audio_feat, ((0, Bp - B), (0, 0)))
    text_bf = text_feat.astype(jnp.bfloat16)
    audio_bf = audio_feat.astype(jnp.bfloat16)

    (w_t, w_a, b, ln_g, ln_b, w_f_pad) = kernel_params

    def act_spec(feat):
        return pl.BlockSpec((TB, feat), lambda i: (i, 0))

    def wt_spec(arr):
        # Constant index_map: weight block stays VMEM-resident across grid steps.
        return pl.BlockSpec(arr.shape, lambda i: (0, 0))

    out = pl.pallas_call(
        fusion_kernel,
        out_shape=jax.ShapeDtypeStruct((Bp, OUT_PAD), jnp.bfloat16),
        grid=(Bp // TB,),
        in_specs=[act_spec(TEXT_IN), act_spec(EMBED),
                  wt_spec(w_t), wt_spec(w_a), wt_spec(b),
                  wt_spec(ln_g), wt_spec(ln_b),
                  wt_spec(w_f_pad)],
        out_specs=pl.BlockSpec((TB, OUT_PAD), lambda i: (i, 0)),
        compiler_params=pltpu.CompilerParams(
            dimension_semantics=("parallel",)),
    )(text_bf, audio_bf, w_t, w_a, b, ln_g, ln_b, w_f_pad)

    return out[:B, :NUM_CLASSES].astype(jnp.float32)


def fusion_reference(text_feat, audio_feat, params):
    """Pure-JAX f32 reference that mirrors the PyTorch forward exactly."""
    text_p = text_feat @ params["w_dp"] + params["b_dp"]
    q = text_p @ params["w_q"] + params["b_q"]
    k = audio_feat @ params["w_k"] + params["b_k"]
    v = audio_feat @ params["w_v"] + params["b_v"]
    scores = jnp.sum(q * k, axis=-1, keepdims=True) / jnp.sqrt(jnp.float32(EMBED))
    attn_w = jax.nn.softmax(scores, axis=-1)        # single key position -> 1.0
    audio_text = (attn_w * v) @ params["w_o"] + params["b_o"]
    concat_x = jnp.concatenate([text_feat, audio_text], axis=-1)
    h = concat_x @ params["w_ma"] + params["b_ma"]
    mu = jnp.mean(h, axis=-1, keepdims=True)
    var = jnp.mean((h - mu) ** 2, axis=-1, keepdims=True)
    x = jax.nn.sigmoid((h - mu) * jax.lax.rsqrt(var + LN_EPS)
                       * params["ln_g"] + params["ln_b"])
    return jnp.maximum(x @ params["w_f"], 0.0)


if __name__ == "__main__":
    key = jax.random.PRNGKey(0)
    k_text, k_audio, k_params = jax.random.split(key, 3)

    B = 8
    text_feat = jax.random.normal(k_text, (B, TEXT_IN), dtype=jnp.float32)   # [8, 128]
    audio_feat = jax.random.normal(k_audio, (B, EMBED), dtype=jnp.float32)   # [8, 256]
    params = init_params(k_params)
    kernel_params = prepare_params(params)

    out = fusion_forward(text_feat, audio_feat, kernel_params)
    jax.block_until_ready(out)
    assert out.shape == (B, NUM_CLASSES)

    ref = fusion_reference(text_feat, audio_feat, params)
    max_err = float(jnp.max(jnp.abs(out - ref)))
    assert max_err < 0.1, f"kernel/reference mismatch: max abs err {max_err}"
    print("KERNEL_OK")
</pallas_src>

<mosaic_0001>
module attributes {stable_mosaic.version = 11 : i64} {
  func.func @fusion_kernel(%arg0: i32, %arg1: memref<8x128xbf16, #tpu.memory_space<vmem>>, %arg2: memref<8x256xbf16, #tpu.memory_space<vmem>>, %arg3: memref<128x384xbf16, #tpu.memory_space<vmem>>, %arg4: memref<256x384xbf16, #tpu.memory_space<vmem>>, %arg5: memref<1x384xf32, #tpu.memory_space<vmem>>, %arg6: memref<1x384xf32, #tpu.memory_space<vmem>>, %arg7: memref<1x384xf32, #tpu.memory_space<vmem>>, %arg8: memref<384x128xbf16, #tpu.memory_space<vmem>>, %arg9: memref<8x128xbf16, #tpu.memory_space<vmem>>) attributes {dimension_semantics = [#tpu.dimension_semantics<parallel>], iteration_bounds = array<i64: 1>, scalar_prefetch = 0 : i64, scratch_operands = 0 : i64, tpu.core_type = #tpu.core_type<tc>, window_params = [{transform_indices = @transform_0, window_bounds = array<i64: 8, 128>}, {transform_indices = @transform_1, window_bounds = array<i64: 8, 256>}, {pipeline_mode = #tpu.pipeline_mode<synchronous>, transform_indices = @transform_2, window_bounds = array<i64: 128, 384>}, {pipeline_mode = #tpu.pipeline_mode<synchronous>, transform_indices = @transform_3, window_bounds = array<i64: 256, 384>}, {pipeline_mode = #tpu.pipeline_mode<synchronous>, transform_indices = @transform_4, window_bounds = array<i64: 1, 384>}, {pipeline_mode = #tpu.pipeline_mode<synchronous>, transform_indices = @transform_5, window_bounds = array<i64: 1, 384>}, {pipeline_mode = #tpu.pipeline_mode<synchronous>, transform_indices = @transform_6, window_bounds = array<i64: 1, 384>}, {pipeline_mode = #tpu.pipeline_mode<synchronous>, transform_indices = @transform_7, window_bounds = array<i64: 384, 128>}, {transform_indices = @transform_8, window_bounds = array<i64: 8, 128>}]} {
    %c0 = arith.constant 0 : index
    %c0_0 = arith.constant 0 : index
    %0 = vector.load %arg1[%c0, %c0_0] : memref<8x128xbf16, #tpu.memory_space<vmem>>, vector<8x128xbf16>
    %c0_1 = arith.constant 0 : index
    %c0_2 = arith.constant 0 : index
    %1 = vector.load %arg3[%c0_1, %c0_2] : memref<128x384xbf16, #tpu.memory_space<vmem>>, vector<128x384xbf16>
    %cst = arith.constant dense<0.000000e+00> : vector<8x384xf32>
    %2 = tpu.matmul %0, %1, %cst {dimension_numbers = #tpu.dot_dimension_numbers<[1], [0], [0], [1], [0, 0, 1, 1], [], []>} : vector<8x128xbf16>, vector<128x384xbf16>, vector<8x384xf32> -> vector<8x384xf32>
    %c0_3 = arith.constant 0 : index
    %c0_4 = arith.constant 0 : index
    %3 = vector.load %arg2[%c0_3, %c0_4] : memref<8x256xbf16, #tpu.memory_space<vmem>>, vector<8x256xbf16>
    %c0_5 = arith.constant 0 : index
    %c0_6 = arith.constant 0 : index
    %4 = vector.load %arg4[%c0_5, %c0_6] : memref<256x384xbf16, #tpu.memory_space<vmem>>, vector<256x384xbf16>
    %cst_7 = arith.constant dense<0.000000e+00> : vector<8x384xf32>
    %5 = tpu.matmul %3, %4, %cst_7 {dimension_numbers = #tpu.dot_dimension_numbers<[1], [0], [0], [1], [0, 0, 1, 1], [], []>} : vector<8x256xbf16>, vector<256x384xbf16>, vector<8x384xf32> -> vector<8x384xf32>
    %6 = arith.addf %2, %5 : vector<8x384xf32>
    %c0_8 = arith.constant 0 : index
    %c0_9 = arith.constant 0 : index
    %7 = vector.load %arg5[%c0_8, %c0_9] : memref<1x384xf32, #tpu.memory_space<vmem>>, vector<1x384xf32>
    %8 = vector.broadcast %7 : vector<1x384xf32> to vector<8x384xf32>
    %9 = arith.addf %6, %8 : vector<8x384xf32>
    %cst_10 = arith.constant dense<0.000000e+00> : vector<8xf32>
    %10 = vector.multi_reduction <add>, %9, %cst_10 [1] : vector<8x384xf32> to vector<8xf32>
    %11 = vector.shape_cast %10 : vector<8xf32> to vector<8x1xf32>
    %cst_11 = arith.constant 3.840000e+02 : f32
    %12 = vector.broadcast %cst_11 : f32 to vector<8x1xf32>
    %13 = arith.divf %11, %12 : vector<8x1xf32>
    %14 = arith.mulf %9, %9 : vector<8x384xf32>
    %cst_12 = arith.constant dense<0.000000e+00> : vector<8xf32>
    %15 = vector.multi_reduction <add>, %14, %cst_12 [1] : vector<8x384xf32> to vector<8xf32>
    %16 = vector.shape_cast %15 : vector<8xf32> to vector<8x1xf32>
    %cst_13 = arith.constant 3.840000e+02 : f32
    %17 = vector.broadcast %cst_13 : f32 to vector<8x1xf32>
    %18 = arith.divf %16, %17 : vector<8x1xf32>
    %19 = arith.mulf %13, %13 : vector<8x1xf32>
    %20 = arith.subf %18, %19 : vector<8x1xf32>
    %21 = vector.broadcast %13 : vector<8x1xf32> to vector<8x384xf32>
    %22 = arith.subf %9, %21 : vector<8x384xf32>
    %cst_14 = arith.constant 9.99999974E-6 : f32
    %23 = vector.broadcast %cst_14 : f32 to vector<8x1xf32>
    %24 = arith.addf %20, %23 : vector<8x1xf32>
    %25 = math.rsqrt %24 : vector<8x1xf32>
    %26 = vector.broadcast %25 : vector<8x1xf32> to vector<8x384xf32>
    %27 = arith.mulf %22, %26 : vector<8x384xf32>
    %c0_15 = arith.constant 0 : index
    %c0_16 = arith.constant 0 : index
    %28 = vector.load %arg6[%c0_15, %c0_16] : memref<1x384xf32, #tpu.memory_space<vmem>>, vector<1x384xf32>
    %29 = vector.broadcast %28 : vector<1x384xf32> to vector<8x384xf32>
    %30 = arith.mulf %27, %29 : vector<8x384xf32>
    %c0_17 = arith.constant 0 : index
    %c0_18 = arith.constant 0 : index
    %31 = vector.load %arg7[%c0_17, %c0_18] : memref<1x384xf32, #tpu.memory_space<vmem>>, vector<1x384xf32>
    %32 = vector.broadcast %31 : vector<1x384xf32> to vector<8x384xf32>
    %33 = arith.addf %30, %32 : vector<8x384xf32>
    %34 = arith.negf %33 : vector<8x384xf32>
    %35 = math.exp %34 : vector<8x384xf32>
    %cst_19 = arith.constant 1.000000e+00 : f32
    %36 = vector.broadcast %cst_19 : f32 to vector<8x384xf32>
    %37 = arith.addf %36, %35 : vector<8x384xf32>
    %38 = arith.divf %36, %37 : vector<8x384xf32>
    %39 = arith.truncf %38 : vector<8x384xf32> to vector<8x384xbf16>
    %c0_20 = arith.constant 0 : index
    %c0_21 = arith.constant 0 : index
    %40 = vector.load %arg8[%c0_20, %c0_21] : memref<384x128xbf16, #tpu.memory_space<vmem>>, vector<384x128xbf16>
    %cst_22 = arith.constant dense<0.000000e+00> : vector<8x128xf32>
    %41 = tpu.matmul %39, %40, %cst_22 {dimension_numbers = #tpu.dot_dimension_numbers<[1], [0], [0], [1], [0, 0, 1, 1], [], []>} : vector<8x384xbf16>, vector<384x128xbf16>, vector<8x128xf32> -> vector<8x128xf32>
    %cst_23 = arith.constant 0.000000e+00 : f32
    %42 = vector.broadcast %cst_23 : f32 to vector<8x128xf32>
    %43 = arith.maximumf %41, %42 : vector<8x128xf32>
    %44 = arith.truncf %43 : vector<8x128xf32> to vector<8x128xbf16>
    %c0_24 = arith.constant 0 : index
    %c0_25 = arith.constant 0 : index
    %45 = vector.load %arg9[%c0_24, %c0_25] : memref<8x128xbf16, #tpu.memory_space<vmem>>, vector<8x128xbf16>
    tpu.vector_store %arg9[%c0_24, %c0_25], %44 {strides = array<i32>} : memref<8x128xbf16, #tpu.memory_space<vmem>>, vector<8x128xbf16>,
    return
  }
  func.func @transform_0(%arg0: i32) -> (i32, i32) {
    %c0_i32 = arith.constant 0 : i32
    %c0_i32_0 = arith.constant 0 : i32
    return %arg0, %c0_i32 : i32, i32
  }
  func.func @transform_1(%arg0: i32) -> (i32, i32) {
    %c0_i32 = arith.constant 0 : i32
    %c0_i32_0 = arith.constant 0 : i32
    return %arg0, %c0_i32 : i32, i32
  }
  func.func @transform_2(%arg0: i32) -> (i32, i32) {
    %c0_i32 = arith.constant 0 : i32
    %c0_i32_0 = arith.constant 0 : i32
    %c0_i32_1 = arith.constant 0 : i32
    return %c0_i32, %c0_i32_0 : i32, i32
  }
  func.func @transform_3(%arg0: i32) -> (i32, i32) {
    %c0_i32 = arith.constant 0 : i32
    %c0_i32_0 = arith.constant 0 : i32
    %c0_i32_1 = arith.constant 0 : i32
    return %c0_i32, %c0_i32_0 : i32, i32
  }
  func.func @transform_4(%arg0: i32) -> (i32, i32) {
    %c0_i32 = arith.constant 0 : i32
    %c0_i32_0 = arith.constant 0 : i32
    %c0_i32_1 = arith.constant 0 : i32
    return %c0_i32, %c0_i32_0 : i32, i32
  }
  func.func @transform_5(%arg0: i32) -> (i32, i32) {
    %c0_i32 = arith.constant 0 : i32
    %c0_i32_0 = arith.constant 0 : i32
    %c0_i32_1 = arith.constant 0 : i32
    return %c0_i32, %c0_i32_0 : i32, i32
  }
  func.func @transform_6(%arg0: i32) -> (i32, i32) {
    %c0_i32 = arith.constant 0 : i32
    %c0_i32_0 = arith.constant 0 : i32
    %c0_i32_1 = arith.constant 0 : i32
    return %c0_i32, %c0_i32_0 : i32, i32
  }
  func.func @transform_7(%arg0: i32) -> (i32, i32) {
    %c0_i32 = arith.constant 0 : i32
    %c0_i32_0 = arith.constant 0 : i32
    %c0_i32_1 = arith.constant 0 : i32
    return %c0_i32, %c0_i32_0 : i32, i32
  }
  func.func @transform_8(%arg0: i32) -> (i32, i32) {
    %c0_i32 = arith.constant 0 : i32
    %c0_i32_0 = arith.constant 0 : i32
    return %arg0, %c0_i32 : i32, i32
  }
}

</mosaic_0001>

<llo_original>
// kernel: tpu_custom_call.1
$region0: #{tpu_custom_call.1}
  #allocation0 [shape = 'u32[]', space=smem, size = 0x4, offset = 0x4, fixed_abs, tag = 'smem constant byte address 0x4 - core index']
  #allocation1 [shape = 'u32[144,128]{1,0:T(1,128)}', space=vmem, size = 0x12000, scoped, tag = 'internal scratch']
  %s0 = inlined_call_operand.hbm [shape: bf16[8,128], index: 0, kind: input, shape index: {}]
  %s1 = inlined_call_operand.hbm [shape: bf16[8,256], index: 1, kind: input, shape index: {}]
  %s2 = inlined_call_operand.hbm [shape: bf16[128,384], index: 2, kind: input, shape index: {}]
  %s3 = inlined_call_operand.hbm [shape: bf16[256,384], index: 3, kind: input, shape index: {}]
  %s4 = inlined_call_operand.vmem [shape: f32[1,384], index: 4, kind: input, shape index: {}]
  %s5 = inlined_call_operand.vmem [shape: f32[1,384], index: 5, kind: input, shape index: {}]
  %s6 = inlined_call_operand.vmem [shape: f32[1,384], index: 6, kind: input, shape index: {}]
  %s7 = inlined_call_operand.hbm [shape: bf16[384,128], index: 7, kind: input, shape index: {}]
  %s8 = inlined_call_operand.hbm [shape: bf16[8,128], index: 8, kind: output, shape index: {}]
  %s9 = sld [smem:[#allocation0]]
  $region62: #{tpu_custom_call.1} parent=0
    _
  %s11 = ssub.s32 1, %s9
  %s12 = scalar_select 0, %s11, %s9
  $region1: #{tpu_custom_call.1} parent=0
    #allocation2 [shape = 'u8[2048]{0}', space=vmem, size = 0x800, scoped, tag = 'input window, operand 0, single buffered']
    #allocation3 [shape = 's32[1]{0}', space=sflag, size = 0x4, scoped, tag = 'scoped memory for tpu_custom_call.1']
    #allocation4 [shape = 's32[1]{0}', space=sflag, size = 0x4, scoped, tag = 'scoped memory for tpu_custom_call.1']
    #allocation5 [shape = 'u8[4096]{0}', space=vmem, size = 0x1000, scoped, tag = 'input window, operand 1, single buffered']
    #allocation6 [shape = 's32[1]{0}', space=sflag, size = 0x4, scoped, tag = 'scoped memory for tpu_custom_call.1']
    #allocation7 [shape = 'u8[98304]{0}', space=vmem, size = 0x18000, scoped, tag = 'input window, operand 2, single buffered']
    #allocation8 [shape = 'u8[196608]{0}', space=vmem, size = 0x30000, scoped, tag = 'input window, operand 3, single buffered']
    #allocation9 [shape = 's32[1]{0}', space=sflag, size = 0x4, scoped, tag = 'scoped memory for tpu_custom_call.1']
    #allocation10 [shape = 'u8[98304]{0}', space=vmem, size = 0x18000, scoped, tag = 'input window, operand 7, single buffered']
    #allocation11 [shape = 'u8[2048]{0}', space=vmem, size = 0x800, scoped, tag = 'output window, operand 0, single buffered']
    %13 = vsyncpa [#allocation3], 0
    %14 = vsyncpa [#allocation6], 0
    %15 = vsyncpa [#allocation9], 0
    %16 = vsyncpa [#allocation4], 0
    // Predicated region
    $region2: #{tpu_custom_call.1} parent=1 // pred_check
      _
    $region3: #{tpu_custom_call.1} parent=1 // pred_check_branch
      %18 = sbr.rel (0) target = $region5
    $region4: #{tpu_custom_call.1} parent=1 // pred_region
      %s20 = ssub.s32 64, 64
      %21 = vsyncadd [#allocation3], %s20
      %s23 = sshll.u32 [#allocation2], 4
      %s24 = int_to_ptr.vmem [resolvable:$true] %s23
      %26 = dma.hbm_to_vmem [thread:$0]  %s0, 64, %s24, [#allocation3]
    $region5: #{tpu_custom_call.1} parent=1 // pred_fallthru
      _
    // Predicated region
    $region6: #{tpu_custom_call.1} parent=1 // pred_check
      _
    $region7: #{tpu_custom_call.1} parent=1 // pred_check_branch
      %28 = sbr.rel (0) target = $region9
    $region8: #{tpu_custom_call.1} parent=1 // pred_region
      %s30 = ssub.s32 128, 128
      %31 = vsyncadd [#allocation6], %s30
      %s33 = sshll.u32 [#allocation5], 4
      %s34 = int_to_ptr.vmem [resolvable:$true] %s33
      %36 = dma.hbm_to_vmem [thread:$0]  %s1, 128, %s34, [#allocation6]
    $region9: #{tpu_custom_call.1} parent=1 // pred_fallthru
      _
    // Predicated region
    $region10: #{tpu_custom_call.1} parent=1 // pred_check
      _
    $region11: #{tpu_custom_call.1} parent=1 // pred_check_branch
      %38 = sbr.rel (0) target = $region13
    $region12: #{tpu_custom_call.1} parent=1 // pred_region
      %s40 = ssub.s32 3072, 3072
      %41 = vsyncadd [#allocation6], %s40
      %s42 = sshll.u32 [#allocation7], 4
      %s43 = int_to_ptr.vmem [resolvable:$true] %s42
      %48 = dma.hbm_to_vmem [thread:$0]  %s2, 3072, %s43, [#allocation6], 192, 192, 12
    $region13: #{tpu_custom_call.1} parent=1 // pred_fallthru
      _
    // Predicated region
    $region14: #{tpu_custom_call.1} parent=1 // pred_check
      _
    $region15: #{tpu_custom_call.1} parent=1 // pred_check_branch
      %50 = sbr.rel (0) target = $region17
    $region16: #{tpu_custom_call.1} parent=1 // pred_region
      %s52 = ssub.s32 6144, 6144
      %53 = vsyncadd [#allocation9], %s52
      %s54 = sshll.u32 [#allocation8], 4
      %s55 = int_to_ptr.vmem [resolvable:$true] %s54
      %60 = dma.hbm_to_vmem [thread:$0]  %s3, 6144, %s55, [#allocation9], 192, 192, 12
    $region17: #{tpu_custom_call.1} parent=1 // pred_fallthru
      _
    // Predicated region
    $region18: #{tpu_custom_call.1} parent=1 // pred_check
      _
    $region19: #{tpu_custom_call.1} parent=1 // pred_check_branch
      %62 = sbr.rel (0) target = $region21
    $region20: #{tpu_custom_call.1} parent=1 // pred_region
      _
    $region21: #{tpu_custom_call.1} parent=1 // pred_fallthru
      _
    // Predicated region
    $region22: #{tpu_custom_call.1} parent=1 // pred_check
      _
    $region23: #{tpu_custom_call.1} parent=1 // pred_check_branch
      %64 = sbr.rel (0) target = $region25
    $region24: #{tpu_custom_call.1} parent=1 // pred_region
      _
    $region25: #{tpu_custom_call.1} parent=1 // pred_fallthru
      _
    // Predicated region
    $region26: #{tpu_custom_call.1} parent=1 // pred_check
      _
    $region27: #{tpu_custom_call.1} parent=1 // pred_check_branch
      %66 = sbr.rel (0) target = $region29
    $region28: #{tpu_custom_call.1} parent=1 // pred_region
      _
    $region29: #{tpu_custom_call.1} parent=1 // pred_fallthru
      _
    // Predicated region
    $region30: #{tpu_custom_call.1} parent=1 // pred_check
      _
    $region31: #{tpu_custom_call.1} parent=1 // pred_check_branch
      %68 = sbr.rel (0) target = $region33
    $region32: #{tpu_custom_call.1} parent=1 // pred_region
      %s70 = ssub.s32 3072, 3072
      %71 = vsyncadd [#allocation9], %s70
      %s72 = sshll.u32 [#allocation10], 4
      %s73 = int_to_ptr.vmem [resolvable:$true] %s72
      %78 = dma.hbm_to_vmem [thread:$0]  %s7, 3072, %s73, [#allocation9], 64, 64, 4
    $region33: #{tpu_custom_call.1} parent=1 // pred_fallthru
      _
    // Predicated region
    $region34: #{tpu_custom_call.1} parent=1 // pred_check
      _
    $region35: #{tpu_custom_call.1} parent=1 // pred_check_branch
      %80 = sbr.rel (0) target = $region37
    $region36: #{tpu_custom_call.1} parent=1 // pred_region
      %81 = dma.done [#allocation3], 64
    $region37: #{tpu_custom_call.1} parent=1 // pred_fallthru
      _
    // Predicated region
    $region38: #{tpu_custom_call.1} parent=1 // pred_check
      _
    $region39: #{tpu_custom_call.1} parent=1 // pred_check_branch
      %83 = sbr.rel (0) target = $region41
    $region40: #{tpu_custom_call.1} parent=1 // pred_region
      %84 = dma.done [#allocation6], 128
    $region41: #{tpu_custom_call.1} parent=1 // pred_fallthru
      _
    // Predicated region
    $region42: #{tpu_custom_call.1} parent=1 // pred_check
      _
    $region43: #{tpu_custom_call.1} parent=1 // pred_check_branch
      %86 = sbr.rel (0) target = $region45
    $region44: #{tpu_custom_call.1} parent=1 // pred_region
      %87 = dma.done [#allocation6], 3072
    $region45: #{tpu_custom_call.1} parent=1 // pred_fallthru
      _
    // Predicated region
    $region46: #{tpu_custom_call.1} parent=1 // pred_check
      _
    $region47: #{tpu_custom_call.1} parent=1 // pred_check_branch
      %89 = sbr.rel (0) target = $region49
    $region48: #{tpu_custom_call.1} parent=1 // pred_region
      %90 = dma.done [#allocation9], 6144
    $region49: #{tpu_custom_call.1} parent=1 // pred_fallthru
      _
    // Predicated region
    $region50: #{tpu_custom_call.1} parent=1 // pred_check
      _
    $region51: #{tpu_custom_call.1} parent=1 // pred_check_branch
      %92 = sbr.rel (0) target = $region53
    $region52: #{tpu_custom_call.1} parent=1 // pred_region
      %93 = dma.done [#allocation9], 3072
    $region53: #{tpu_custom_call.1} parent=1 // pred_fallthru
      _
    %v95 = vld [vmem:[#allocation2] sm:$0xf]
    %v96 = vld [vmem:[#allocation7] sm:$0xff]
    %v97 = vld [vmem:[#allocation7 + $0x8] sm:$0xf]
    %v98 = vld [vmem:[#allocation7 + $0xc] sm:$0xff]
    %v99 = vld [vmem:[#allocation7 + $0x14] sm:$0xf]
    %v100 = vld [vmem:[#allocation7 + $0x18] sm:$0xff]
    %v101 = vld [vmem:[#allocation7 + $0x20] sm:$0xf]
    %v102 = vld [vmem:[#allocation7 + $0x24] sm:$0xff]
    %v103 = vld [vmem:[#allocation7 + $0x2c] sm:$0xf]
    %v104 = vld [vmem:[#allocation7 + $0x30] sm:$0xff]
    %v105 = vld [vmem:[#allocation7 + $0x38] sm:$0xf]
    %v106 = vld [vmem:[#allocation7 + $0x3c] sm:$0xff]
    %v107 = vld [vmem:[#allocation7 + $0x44] sm:$0xf]
    %v108 = vld [vmem:[#allocation7 + $0x48] sm:$0xff]
    %v109 = vld [vmem:[#allocation7 + $0x50] sm:$0xf]
    %v110 = vld [vmem:[#allocation7 + $0x54] sm:$0xff]
    %v111 = vld [vmem:[#allocation7 + $0x5c] sm:$0xf]
    %v112 = vld [vmem:[#allocation7 + $0x60] sm:$0xff]
    %v113 = vld [vmem:[#allocation7 + $0x68] sm:$0xf]
    %v114 = vld [vmem:[#allocation7 + $0x6c] sm:$0xff]
    %v115 = vld [vmem:[#allocation7 + $0x74] sm:$0xf]
    %v116 = vld [vmem:[#allocation7 + $0x78] sm:$0xff]
    %v117 = vld [vmem:[#allocation7 + $0x80] sm:$0xf]
    %v118 = vld [vmem:[#allocation7 + $0x84] sm:$0xff]
    %v119 = vld [vmem:[#allocation7 + $0x8c] sm:$0xf]
    %v120 = vld [vmem:[#allocation7 + $0x90] sm:$0xff]
    %v121 = vld [vmem:[#allocation7 + $0x98] sm:$0xf]
    %v122 = vld [vmem:[#allocation7 + $0x9c] sm:$0xff]
    %v123 = vld [vmem:[#allocation7 + $0xa4] sm:$0xf]
    %v124 = vld [vmem:[#allocation7 + $0xa8] sm:$0xff]
    %v125 = vld [vmem:[#allocation7 + $0xb0] sm:$0xf]
    %v126 = vld [vmem:[#allocation7 + $0xb4] sm:$0xff]
    %v127 = vld [vmem:[#allocation7 + $0xbc] sm:$0xf]
    %v128 = vld [vmem:[#allocation5] sm:$0xff]
    %v129 = vld [vmem:[#allocation8] sm:$0xff]
    %v130 = vld [vmem:[#allocation8 + $0x8] sm:$0xf]
    %v131 = vld [vmem:[#allocation8 + $0xc] sm:$0xff]
    %v132 = vld [vmem:[#allocation8 + $0x14] sm:$0xf]
    %v133 = vld [vmem:[#allocation8 + $0x18] sm:$0xff]
    %v134 = vld [vmem:[#allocation8 + $0x20] sm:$0xf]
    %v135 = vld [vmem:[#allocation8 + $0x24] sm:$0xff]
    %v136 = vld [vmem:[#allocation8 + $0x2c] sm:$0xf]
    %v137 = vld [vmem:[#allocation8 + $0x30] sm:$0xff]
    %v138 = vld [vmem:[#allocation8 + $0x38] sm:$0xf]
    %v139 = vld [vmem:[#allocation8 + $0x3c] sm:$0xff]
    %v140 = vld [vmem:[#allocation8 + $0x44] sm:$0xf]
    %v141 = vld [vmem:[#allocation8 + $0x48] sm:$0xff]
    %v142 = vld [vmem:[#allocation8 + $0x50] sm:$0xf]
    %v143 = vld [vmem:[#allocation8 + $0x54] sm:$0xff]
    %v144 = vld [vmem:[#allocation8 + $0x5c] sm:$0xf]
    %v145 = vld [vmem:[#allocation8 + $0x60] sm:$0xff]
    %v146 = vld [vmem:[#allocation8 + $0x68] sm:$0xf]
    %v147 = vld [vmem:[#allocation8 + $0x6c] sm:$0xff]
    %v148 = vld [vmem:[#allocation8 + $0x74] sm:$0xf]
    %v149 = vld [vmem:[#allocation8 + $0x78] sm:$0xff]
    %v150 = vld [vmem:[#allocation8 + $0x80] sm:$0xf]
    %v151 = vld [vmem:[#allocation8 + $0x84] sm:$0xff]
    %v152 = vld [vmem:[#allocation8 + $0x8c] sm:$0xf]
    %v153 = vld [vmem:[#allocation8 + $0x90] sm:$0xff]
    %v154 = vld [vmem:[#allocation8 + $0x98] sm:$0xf]
    %v155 = vld [vmem:[#allocation8 + $0x9c] sm:$0xff]
    %v156 = vld [vmem:[#allocation8 + $0xa4] sm:$0xf]
    %v157 = vld [vmem:[#allocation8 + $0xa8] sm:$0xff]
    %v158 = vld [vmem:[#allocation8 + $0xb0] sm:$0xf]
    %v159 = vld [vmem:[#allocation8 + $0xb4] sm:$0xff]
    %v160 = vld [vmem:[#allocation8 + $0xbc] sm:$0xf]
    %v161 = vld [vmem:[#allocation8 + $0xc0] sm:$0xff]
    %v162 = vld [vmem:[#allocation8 + $0xc8] sm:$0xf]
    %v163 = vld [vmem:[#allocation8 + $0xcc] sm:$0xff]
    %v164 = vld [vmem:[#allocation8 + $0xd4] sm:$0xf]
    %v165 = vld [vmem:[#allocation8 + $0xd8] sm:$0xff]
    %v166 = vld [vmem:[#allocation8 + $0xe0] sm:$0xf]
    %v167 = vld [vmem:[#allocation8 + $0xe4] sm:$0xff]
    %v168 = vld [vmem:[#allocation8 + $0xec] sm:$0xf]
    %v169 = vld [vmem:[#allocation8 + $0xf0] sm:$0xff]
    %v170 = vld [vmem:[#allocation8 + $0xf8] sm:$0xf]
    %v171 = vld [vmem:[#allocation8 + $0xfc] sm:$0xff]
    %v172 = vld [vmem:[#allocation8 + $0x104] sm:$0xf]
    %v173 = vld [vmem:[#allocation8 + $0x108] sm:$0xff]
    %v174 = vld [vmem:[#allocation8 + $0x110] sm:$0xf]
    %v175 = vld [vmem:[#allocation8 + $0x114] sm:$0xff]
    %v176 = vld [vmem:[#allocation8 + $0x11c] sm:$0xf]
    %v177 = vld [vmem:[#allocation8 + $0x120] sm:$0xff]
    %v178 = vld [vmem:[#allocation8 + $0x128] sm:$0xf]
    %v179 = vld [vmem:[#allocation8 + $0x12c] sm:$0xff]
    %v180 = vld [vmem:[#allocation8 + $0x134] sm:$0xf]
    %v181 = vld [vmem:[#allocation8 + $0x138] sm:$0xff]
    %v182 = vld [vmem:[#allocation8 + $0x140] sm:$0xf]
    %v183 = vld [vmem:[#allocation8 + $0x144] sm:$0xff]
    %v184 = vld [vmem:[#allocation8 + $0x14c] sm:$0xf]
    %v185 = vld [vmem:[#allocation8 + $0x150] sm:$0xff]
    %v186 = vld [vmem:[#allocation8 + $0x158] sm:$0xf]
    %v187 = vld [vmem:[#allocation8 + $0x15c] sm:$0xff]
    %v188 = vld [vmem:[#allocation8 + $0x164] sm:$0xf]
    %v189 = vld [vmem:[#allocation8 + $0x168] sm:$0xff]
    %v190 = vld [vmem:[#allocation8 + $0x170] sm:$0xf]
    %v191 = vld [vmem:[#allocation8 + $0x174] sm:$0xff]
    %v192 = vld [vmem:[#allocation8 + $0x17c] sm:$0xf]
    %v194 = vunpack.c.l.b16 %v128
    %v195 = vunpack.c.h.b16 %v128
    %v196 = vpack.c.b16 %v194, %v194
    %v197 = vpack.c.b16 %v195, %v195
    %v264 = vunpack.c.l.b16 %v129
    %v265 = vunpack.c.h.b16 %v129
    %v266 = vunpack.c.l.b16 %v130
    %v267 = vunpack.c.l.b16 %v131
    %v268 = vunpack.c.h.b16 %v131
    %v269 = vunpack.c.l.b16 %v132
    %v270 = vunpack.c.l.b16 %v133
    %v271 = vunpack.c.h.b16 %v133
    %v272 = vunpack.c.l.b16 %v134
    %v273 = vunpack.c.l.b16 %v135
    %v274 = vunpack.c.h.b16 %v135
    %v275 = vunpack.c.l.b16 %v136
    %v276 = vunpack.c.l.b16 %v137
    %v277 = vunpack.c.h.b16 %v137
    %v278 = vunpack.c.l.b16 %v138
    %v279 = vunpack.c.l.b16 %v139
    %v280 = vunpack.c.h.b16 %v139
    %v281 = vunpack.c.l.b16 %v140
    %v282 = vunpack.c.l.b16 %v141
    %v283 = vunpack.c.h.b16 %v141
    %v284 = vunpack.c.l.b16 %v142
    %v285 = vunpack.c.l.b16 %v143
    %v286 = vunpack.c.h.b16 %v143
    %v287 = vunpack.c.l.b16 %v144
    %v288 = vunpack.c.l.b16 %v145
    %v289 = vunpack.c.h.b16 %v145
    %v290 = vunpack.c.l.b16 %v146
    %v291 = vunpack.c.l.b16 %v147
    %v292 = vunpack.c.h.b16 %v147
    %v293 = vunpack.c.l.b16 %v148
    %v294 = vunpack.c.l.b16 %v149
    %v295 = vunpack.c.h.b16 %v149
    %v296 = vunpack.c.l.b16 %v150
    %v297 = vunpack.c.l.b16 %v151
    %v298 = vunpack.c.h.b16 %v151
    %v299 = vunpack.c.l.b16 %v152
    %v300 = vunpack.c.l.b16 %v153
    %v301 = vunpack.c.h.b16 %v153
    %v302 = vunpack.c.l.b16 %v154
    %v303 = vunpack.c.l.b16 %v155
    %v304 = vunpack.c.h.b16 %v155
    %v305 = vunpack.c.l.b16 %v156
    %v306 = vunpack.c.l.b16 %v157
    %v307 = vunpack.c.h.b16 %v157
    %v308 = vunpack.c.l.b16 %v158
    %v309 = vunpack.c.l.b16 %v159
    %v310 = vunpack.c.h.b16 %v159
    %v311 = vunpack.c.l.b16 %v160
    %v312 = vunpack.c.l.b16 %v161
    %v313 = vunpack.c.h.b16 %v161
    %v314 = vunpack.c.l.b16 %v162
    %v315 = vunpack.c.l.b16 %v163
    %v316 = vunpack.c.h.b16 %v163
    %v317 = vunpack.c.l.b16 %v164
    %v318 = vunpack.c.l.b16 %v165
    %v319 = vunpack.c.h.b16 %v165
    %v320 = vunpack.c.l.b16 %v166
    %v321 = vunpack.c.l.b16 %v167
    %v322 = vunpack.c.h.b16 %v167
    %v323 = vunpack.c.l.b16 %v168
    %v324 = vunpack.c.l.b16 %v169
    %v325 = vunpack.c.h.b16 %v169
    %v326 = vunpack.c.l.b16 %v170
    %v327 = vunpack.c.l.b16 %v171
    %v328 = vunpack.c.h.b16 %v171
    %v329 = vunpack.c.l.b16 %v172
    %v330 = vunpack.c.l.b16 %v173
    %v331 = vunpack.c.h.b16 %v173
    %v332 = vunpack.c.l.b16 %v174
    %v333 = vunpack.c.l.b16 %v175
    %v334 = vunpack.c.h.b16 %v175
    %v335 = vunpack.c.l.b16 %v176
    %v336 = vunpack.c.l.b16 %v177
    %v337 = vunpack.c.h.b16 %v177
    %v338 = vunpack.c.l.b16 %v178
    %v339 = vunpack.c.l.b16 %v179
    %v340 = vunpack.c.h.b16 %v179
    %v341 = vunpack.c.l.b16 %v180
    %v342 = vunpack.c.l.b16 %v181
    %v343 = vunpack.c.h.b16 %v181
    %v344 = vunpack.c.l.b16 %v182
    %v345 = vunpack.c.l.b16 %v183
    %v346 = vunpack.c.h.b16 %v183
    %v347 = vunpack.c.l.b16 %v184
    %v348 = vunpack.c.l.b16 %v185
    %v349 = vunpack.c.h.b16 %v185
    %v350 = vunpack.c.l.b16 %v186
    %v351 = vunpack.c.l.b16 %v187
    %v352 = vunpack.c.h.b16 %v187
    %v353 = vunpack.c.l.b16 %v188
    %v354 = vunpack.c.l.b16 %v189
    %v355 = vunpack.c.h.b16 %v189
    %v356 = vunpack.c.l.b16 %v190
    %v357 = vunpack.c.l.b16 %v191
    %v358 = vunpack.c.h.b16 %v191
    %v359 = vunpack.c.l.b16 %v192
    %v360 = vpack.c.b16 %v267, %v264
    %v361 = vpack.c.b16 %v268, %v265
    %v362 = vpack.c.b16 %v269, %v266
    %v363 = vpack.c.b16 %v273, %v270
    %v364 = vpack.c.b16 %v274, %v271
    %v365 = vpack.c.b16 %v275, %v272
    %v366 = vpack.c.b16 %v279, %v276
    %v367 = vpack.c.b16 %v280, %v277
    %v368 = vpack.c.b16 %v281, %v278
    %v369 = vpack.c.b16 %v285, %v282
    %v370 = vpack.c.b16 %v286, %v283
    %v371 = vpack.c.b16 %v287, %v284
    %v372 = vpack.c.b16 %v291, %v288
    %v373 = vpack.c.b16 %v292, %v289
    %v374 = vpack.c.b16 %v293, %v290
    %v375 = vpack.c.b16 %v297, %v294
    %v376 = vpack.c.b16 %v298, %v295
    %v377 = vpack.c.b16 %v299, %v296
    %v378 = vpack.c.b16 %v303, %v300
    %v379 = vpack.c.b16 %v304, %v301
    %v380 = vpack.c.b16 %v305, %v302
    %v381 = vpack.c.b16 %v309, %v306
    %v382 = vpack.c.b16 %v310, %v307
    %v383 = vpack.c.b16 %v311, %v308
    %v384 = vpack.c.b16 %v315, %v312
    %v385 = vpack.c.b16 %v316, %v313
    %v386 = vpack.c.b16 %v317, %v314
    %v387 = vpack.c.b16 %v321, %v318
    %v388 = vpack.c.b16 %v322, %v319
    %v389 = vpack.c.b16 %v323, %v320
    %v390 = vpack.c.b16 %v327, %v324
    %v391 = vpack.c.b16 %v328, %v325
    %v392 = vpack.c.b16 %v329, %v326
    %v393 = vpack.c.b16 %v333, %v330
    %v394 = vpack.c.b16 %v334, %v331
    %v395 = vpack.c.b16 %v335, %v332
    %v396 = vpack.c.b16 %v339, %v336
    %v397 = vpack.c.b16 %v340, %v337
    %v398 = vpack.c.b16 %v341, %v338
    %v399 = vpack.c.b16 %v345, %v342
    %v400 = vpack.c.b16 %v346, %v343
    %v401 = vpack.c.b16 %v347, %v344
    %v402 = vpack.c.b16 %v351, %v348
    %v403 = vpack.c.b16 %v352, %v349
    %v404 = vpack.c.b16 %v353, %v350
    %v405 = vpack.c.b16 %v357, %v354
    %v406 = vpack.c.b16 %v358, %v355
    %v407 = vpack.c.b16 %v359, %v356
    %456 = vmatprep.subr.bf16.mxu0 %v361
    %457 = vmatpush1.bf16.msra.mxu0 %v360
    %458 = vmatprep.subr.bf16.mxu0 %v364
    %459 = vmatpush1.bf16.msra.mxu0 %v363
    %460 = vmatprep.subr.bf16.mxu0 %v367
    %461 = vmatpush1.bf16.msra.mxu0 %v366
    %462 = vmatprep.subr.bf16.mxu0 %v370
    %463 = vmatpush1.bf16.msra.mxu0 %v369
    %464 = vmatprep.subr.bf16.mxu0 %v373
    %465 = vmatpush1.bf16.msra.mxu0 %v372
    %466 = vmatprep.subr.bf16.mxu0 %v376
    %467 = vmatpush1.bf16.msra.mxu0 %v375
    %468 = vmatprep.subr.bf16.mxu0 %v379
    %469 = vmatpush1.bf16.msra.mxu0 %v378
    %470 = vmatprep.subr.bf16.mxu0 %v382
    %471 = vmatpush1.bf16.msra.mxu0 %v381
    %472 = vmatprep.subr.bf16.mxu0 %v385
    %473 = vmatpush1.bf16.msra.mxu0 %v384
    %474 = vmatprep.subr.bf16.mxu0 %v388
    %475 = vmatpush1.bf16.msra.mxu0 %v387
    %476 = vmatprep.subr.bf16.mxu0 %v391
    %477 = vmatpush1.bf16.msra.mxu0 %v390
    %478 = vmatprep.subr.bf16.mxu0 %v394
    %479 = vmatpush1.bf16.msra.mxu0 %v393
    %480 = vmatprep.subr.bf16.mxu0 %v397
    %481 = vmatpush1.bf16.msra.mxu0 %v396
    %482 = vmatprep.subr.bf16.mxu0 %v400
    %483 = vmatpush1.bf16.msra.mxu0 %v399
    %484 = vmatprep.subr.bf16.mxu0 %v403
    %485 = vmatpush1.bf16.msra.mxu0 %v402
    %486 = vmatprep.subr.bf16.mxu0 %v406
    %487 = vmatpush1.bf16.msra.mxu0 %v405
    %488 = vmatprep.mubr.bf16.mxu0 %v197
    %489 = vmatmul.mubr.bf16.gmra.mrb[0].mxu0 %v196
    %v490 = vpop.f32.mrb[0].mxu0
    %v491 = vadd.f32 0.0, %v490
    %v492 = vpop.f32.mrb[0].mxu0
    %v493 = vadd.f32 0.0, %v492
    %v494 = vpop.f32.mrb[0].mxu0
    %v495 = vpop.f32.mrb[0].mxu0
    %496 = vdwg.mxu0
    %497 = vmatprep.subr.bf16.mxu0 0
    %498 = vmatpush1.bf16.msra.mxu0 %v362
    %499 = vmatprep.subr.bf16.mxu0 0
    %500 = vmatpush1.bf16.msra.mxu0 %v365
    %501 = vmatprep.subr.bf16.mxu0 0
    %502 = vmatpush1.bf16.msra.mxu0 %v368
    %503 = vmatprep.subr.bf16.mxu0 0
    %504 = vmatpush1.bf16.msra.mxu0 %v371
    %505 = vmatprep.subr.bf16.mxu0 0
    %506 = vmatpush1.bf16.msra.mxu0 %v374
    %507 = vmatprep.subr.bf16.mxu0 0
    %508 = vmatpush1.bf16.msra.mxu0 %v377
    %509 = vmatprep.subr.bf16.mxu0 0
    %510 = vmatpush1.bf16.msra.mxu0 %v380
    %511 = vmatprep.subr.bf16.mxu0 0
    %512 = vmatpush1.bf16.msra.mxu0 %v383
    %513 = vmatprep.subr.bf16.mxu0 0
    %514 = vmatpush1.bf16.msra.mxu0 %v386
    %515 = vmatprep.subr.bf16.mxu0 0
    %516 = vmatpush1.bf16.msra.mxu0 %v389
    %517 = vmatprep.subr.bf16.mxu0 0
    %518 = vmatpush1.bf16.msra.mxu0 %v392
    %519 = vmatprep.subr.bf16.mxu0 0
    %520 = vmatpush1.bf16.msra.mxu0 %v395
    %521 = vmatprep.subr.bf16.mxu0 0
    %522 = vmatpush1.bf16.msra.mxu0 %v398
    %523 = vmatprep.subr.bf16.mxu0 0
    %524 = vmatpush1.bf16.msra.mxu0 %v401
    %525 = vmatprep.subr.bf16.mxu0 0
    %526 = vmatpush1.bf16.msra.mxu0 %v404
    %527 = vmatprep.subr.bf16.mxu0 0
    %528 = vmatpush1.bf16.msra.mxu0 %v407
    %529 = vmatprep.mubr.bf16.mxu0 %v197
    %530 = vmatmul.mubr.bf16.gmra.mrb[0].mxu0 %v196
    %v531 = vpop.f32.mrb[0].mxu0
    %v532 = vadd.f32 0.0, %v531
    %v533 = vpop.f32.mrb[0].mxu0
    %v534 = vpop.f32.mrb[0].mxu0
    %v535 = vpop.f32.mrb[0].mxu0
    %536 = vdwg.mxu0
    %v569 = vunpack.c.l.b16 %v96
    %v570 = vunpack.c.h.b16 %v96
    %v571 = vunpack.c.l.b16 %v97
    %v572 = vunpack.c.l.b16 %v98
    %v573 = vunpack.c.h.b16 %v98
    %v574 = vunpack.c.l.b16 %v99
    %v575 = vunpack.c.l.b16 %v100
    %v576 = vunpack.c.h.b16 %v100
    %v577 = vunpack.c.l.b16 %v101
    %v578 = vunpack.c.l.b16 %v102
    %v579 = vunpack.c.h.b16 %v102
    %v580 = vunpack.c.l.b16 %v103
    %v581 = vunpack.c.l.b16 %v104
    %v582 = vunpack.c.h.b16 %v104
    %v583 = vunpack.c.l.b16 %v105
    %v584 = vunpack.c.l.b16 %v106
    %v585 = vunpack.c.h.b16 %v106
    %v586 = vunpack.c.l.b16 %v107
    %v587 = vunpack.c.l.b16 %v108
    %v588 = vunpack.c.h.b16 %v108
    %v589 = vunpack.c.l.b16 %v109
    %v590 = vunpack.c.l.b16 %v110
    %v591 = vunpack.c.h.b16 %v110
    %v592 = vunpack.c.l.b16 %v111
    %v593 = vunpack.c.l.b16 %v112
    %v594 = vunpack.c.h.b16 %v112
    %v595 = vunpack.c.l.b16 %v113
    %v596 = vunpack.c.l.b16 %v114
    %v597 = vunpack.c.h.b16 %v114
    %v598 = vunpack.c.l.b16 %v115
    %v599 = vunpack.c.l.b16 %v116
    %v600 = vunpack.c.h.b16 %v116
    %v601 = vunpack.c.l.b16 %v117
    %v602 = vunpack.c.l.b16 %v118
    %v603 = vunpack.c.h.b16 %v118
    %v604 = vunpack.c.l.b16 %v119
    %v605 = vunpack.c.l.b16 %v120
    %v606 = vunpack.c.h.b16 %v120
    %v607 = vunpack.c.l.b16 %v121
    %v608 = vunpack.c.l.b16 %v122
    %v609 = vunpack.c.h.b16 %v122
    %v610 = vunpack.c.l.b16 %v123
    %v611 = vunpack.c.l.b16 %v124
    %v612 = vunpack.c.h.b16 %v124
    %v613 = vunpack.c.l.b16 %v125
    %v614 = vunpack.c.l.b16 %v126
    %v615 = vunpack.c.h.b16 %v126
    %v616 = vunpack.c.l.b16 %v127
    %v617 = vpack.c.b16 %v572, %v569
    %v618 = vpack.c.b16 %v573, %v570
    %v619 = vpack.c.b16 %v574, %v571
    %v620 = vpack.c.b16 %v578, %v575
    %v621 = vpack.c.b16 %v579, %v576
    %v622 = vpack.c.b16 %v580, %v577
    %v623 = vpack.c.b16 %v584, %v581
    %v624 = vpack.c.b16 %v585, %v582
    %v625 = vpack.c.b16 %v586, %v583
    %v626 = vpack.c.b16 %v590, %v587
    %v627 = vpack.c.b16 %v591, %v588
    %v628 = vpack.c.b16 %v592, %v589
    %v629 = vpack.c.b16 %v596, %v593
    %v630 = vpack.c.b16 %v597, %v594
    %v631 = vpack.c.b16 %v598, %v595
    %v632 = vpack.c.b16 %v602, %v599
    %v633 = vpack.c.b16 %v603, %v600
    %v634 = vpack.c.b16 %v604, %v601
    %v635 = vpack.c.b16 %v608, %v605
    %v636 = vpack.c.b16 %v609, %v606
    %v637 = vpack.c.b16 %v610, %v607
    %v638 = vpack.c.b16 %v614, %v611
    %v639 = vpack.c.b16 %v615, %v612
    %v640 = vpack.c.b16 %v616, %v613
    %665 = vmatprep.subr.bf16.mxu0 %v618
    %666 = vmatpush1.bf16.msra.mxu0 %v617
    %667 = vmatprep.subr.bf16.mxu0 %v621
    %668 = vmatpush1.bf16.msra.mxu0 %v620
    %669 = vmatprep.subr.bf16.mxu0 %v624
    %670 = vmatpush1.bf16.msra.mxu0 %v623
    %671 = vmatprep.subr.bf16.mxu0 %v627
    %672 = vmatpush1.bf16.msra.mxu0 %v626
    %673 = vmatprep.subr.bf16.mxu0 %v630
    %674 = vmatpush1.bf16.msra.mxu0 %v629
    %675 = vmatprep.subr.bf16.mxu0 %v633
    %676 = vmatpush1.bf16.msra.mxu0 %v632
    %677 = vmatprep.subr.bf16.mxu0 %v636
    %678 = vmatpush1.bf16.msra.mxu0 %v635
    %679 = vmatprep.subr.bf16.mxu0 %v639
    %680 = vmatpush1.bf16.msra.mxu0 %v638
    %681 = vmatprep.subr.bf16.mxu0 0
    %682 = vmatpush1.bf16.msra.mxu0 0
    %683 = vmatprep.subr.bf16.mxu0 0
    %684 = vmatpush1.bf16.msra.mxu0 0
    %685 = vmatprep.subr.bf16.mxu0 0
    %686 = vmatpush1.bf16.msra.mxu0 0
    %687 = vmatprep.subr.bf16.mxu0 0
    %688 = vmatpush1.bf16.msra.mxu0 0
    %689 = vmatprep.subr.bf16.mxu0 0
    %690 = vmatpush1.bf16.msra.mxu0 0
    %691 = vmatprep.subr.bf16.mxu0 0
    %692 = vmatpush1.bf16.msra.mxu0 0
    %693 = vmatprep.subr.bf16.mxu0 0
    %694 = vmatpush1.bf16.msra.mxu0 0
    %695 = vmatprep.subr.bf16.mxu0 0
    %696 = vmatpush1.bf16.msra.mxu0 0
    %697 = vmatprep.mubr.bf16.mxu0 0
    %698 = vmatmul.mubr.bf16.gmra.mrb[0].mxu0 %v95
    %v699 = vpop.f32.mrb[0].mxu0
    %v700 = vadd.f32 %v491, %v699
    %v701 = vpop.f32.mrb[0].mxu0
    %v702 = vadd.f32 %v493, %v701
    %v703 = vpop.f32.mrb[0].mxu0
    %v704 = vpop.f32.mrb[0].mxu0
    %705 = vdwg.mxu0
    %706 = vmatprep.subr.bf16.mxu0 0
    %707 = vmatpush1.bf16.msra.mxu0 %v619
    %708 = vmatprep.subr.bf16.mxu0 0
    %709 = vmatpush1.bf16.msra.mxu0 %v622
    %710 = vmatprep.subr.bf16.mxu0 0
    %711 = vmatpush1.bf16.msra.mxu0 %v625
    %712 = vmatprep.subr.bf16.mxu0 0
    %713 = vmatpush1.bf16.msra.mxu0 %v628
    %714 = vmatprep.subr.bf16.mxu0 0
    %715 = vmatpush1.bf16.msra.mxu0 %v631
    %716 = vmatprep.subr.bf16.mxu0 0
    %717 = vmatpush1.bf16.msra.mxu0 %v634
    %718 = vmatprep.subr.bf16.mxu0 0
    %719 = vmatpush1.bf16.msra.mxu0 %v637
    %720 = vmatprep.subr.bf16.mxu0 0
    %721 = vmatpush1.bf16.msra.mxu0 %v640
    %722 = vmatprep.subr.bf16.mxu0 0
    %723 = vmatpush1.bf16.msra.mxu0 0
    %724 = vmatprep.subr.bf16.mxu0 0
    %725 = vmatpush1.bf16.msra.mxu0 0
    %726 = vmatprep.subr.bf16.mxu0 0
    %727 = vmatpush1.bf16.msra.mxu0 0
    %728 = vmatprep.subr.bf16.mxu0 0
    %729 = vmatpush1.bf16.msra.mxu0 0
    %730 = vmatprep.subr.bf16.mxu0 0
    %731 = vmatpush1.bf16.msra.mxu0 0
    %732 = vmatprep.subr.bf16.mxu0 0
    %733 = vmatpush1.bf16.msra.mxu0 0
    %734 = vmatprep.subr.bf16.mxu0 0
    %735 = vmatpush1.bf16.msra.mxu0 0
    %736 = vmatprep.subr.bf16.mxu0 0
    %737 = vmatpush1.bf16.msra.mxu0 0
    %738 = vmatprep.mubr.bf16.mxu0 0
    %739 = vmatmul.mubr.bf16.gmra.mrb[0].mxu0 %v95
    %v740 = vpop.f32.mrb[0].mxu0
    %v741 = vadd.f32 %v532, %v740
    %v742 = vpop.f32.mrb[0].mxu0
    %v743 = vpop.f32.mrb[0].mxu0
    %v744 = vpop.f32.mrb[0].mxu0
    %745 = vdwg.mxu0
    %v746 = vld [vmem:[%s4] sm:$0x7]
    %v748 = vlaneseq
    %v749 = vshrl.u32 %v748, 7
    %v750 = vsub.s32 0, %v749
    %v751 = vrot.slane %v746, %v750
    %v752 = vlaneseq
    %v753 = vshrl.u32 %v752, 7
    %v754 = vsub.s32 1, %v753
    %v755 = vrot.slane %v746, %v754
    %v756 = vlaneseq
    %v757 = vshrl.u32 %v756, 7
    %v758 = vsub.s32 2, %v757
    %v759 = vrot.slane %v746, %v758
    %v763 = vadd.f32 %v700, %v751
    %v764 = vadd.f32 %v702, %v755
    %v765 = vadd.f32 %v741, %v759
    %v766 = vadd.f32 %v763, %v764
    %v767 = vadd.f32 %v766, %v765
    %768 = vadd.xlane.f32.xlu0 %v767
    %v769 = vpop.xlane.xlu0 %768
    %v770 = vrcp.pop 384.0
    %v771 = vmul.f32 %v769, %v770
    %v772 = vmul.f32 %v763, %v763
    %v773 = vmul.f32 %v764, %v764
    %v774 = vmul.f32 %v765, %v765
    %v775 = vadd.f32 %v772, %v773
    %v776 = vadd.f32 %v775, %v774
    %777 = vadd.xlane.f32.xlu0 %v776
    %v778 = vpop.xlane.xlu0 %777
    %v779 = vmul.f32 %v778, %v770
    %v780 = vmul.f32 %v771, %v771
    %v781 = vsub.f32 %v779, %v780
    %v782 = vsub.f32 %v763, %v771
    %v783 = vsub.f32 %v764, %v771
    %v784 = vsub.f32 %v765, %v771
    %v785 = vadd.f32 %v781, 1e-05
    %v786 = vrsqrt.pop %v785
    %v787 = vmul.f32 %v782, %v786
    %v788 = vmul.f32 %v783, %v786
    %v789 = vmul.f32 %v784, %v786
    %v790 = vld [vmem:[%s5] sm:$0x7]
    %v792 = vlaneseq
    %v793 = vshrl.u32 %v792, 7
    %v794 = vsub.s32 0, %v793
    %v795 = vrot.slane %v790, %v794
    %v796 = vlaneseq
    %v797 = vshrl.u32 %v796, 7
    %v798 = vsub.s32 1, %v797
    %v799 = vrot.slane %v790, %v798
    %v800 = vlaneseq
    %v801 = vshrl.u32 %v800, 7
    %v802 = vsub.s32 2, %v801
    %v803 = vrot.slane %v790, %v802
    %v807 = vmul.f32 %v787, %v795
    %v808 = vmul.f32 %v788, %v799
    %v809 = vmul.f32 %v789, %v803
    %v810 = vld [vmem:[%s6] sm:$0x7]
    %v812 = vlaneseq
    %v813 = vshrl.u32 %v812, 7
    %v814 = vsub.s32 0, %v813
    %v815 = vrot.slane %v810, %v814
    %v816 = vlaneseq
    %v817 = vshrl.u32 %v816, 7
    %v818 = vsub.s32 1, %v817
    %v819 = vrot.slane %v810, %v818
    %v820 = vlaneseq
    %v821 = vshrl.u32 %v820, 7
    %v822 = vsub.s32 2, %v821
    %v823 = vrot.slane %v810, %v822
    %v827 = vadd.f32 %v807, %v815
    %v828 = vadd.f32 %v808, %v819
    %v829 = vadd.f32 %v809, %v823
    %v830 = vxor.u32 %v827, 2147483648
    %v831 = vxor.u32 %v828, 2147483648
    %v832 = vxor.u32 %v829, 2147483648
    %v833 = vmul.f32 %v830, 1.442695
    %v834 = vpow.pop %v833
    %v835 = vmul.f32 %v831, 1.442695
    %v836 = vpow.pop %v835
    %v837 = vmul.f32 %v832, 1.442695
    %v838 = vpow.pop %v837
    %v839 = vadd.f32 %v834, 1.0
    %v840 = vadd.f32 %v836, 1.0
    %v841 = vadd.f32 %v838, 1.0
    %v842 = vrcp.pop %v839
    %v843 = vmul.f32 1.0, %v842
    %v844 = vrcp.pop %v840
    %v845 = vmul.f32 1.0, %v844
    %v846 = vrcp.pop %v841
    %v847 = vmul.f32 1.0, %v846
    %v848 = vpack.c.bf16 %v843, %v843
    %v849 = vpack.c.bf16 %v845, %v845
    %v850 = vpack.c.bf16 %v847, %v847
    %v851 = vld [vmem:[#allocation10] sm:$0xf]
    %v852 = vld [vmem:[#allocation10 + $0x4] sm:$0xf]
    %v853 = vld [vmem:[#allocation10 + $0x8] sm:$0xf]
    %v854 = vld [vmem:[#allocation10 + $0xc] sm:$0xf]
    %v855 = vld [vmem:[#allocation10 + $0x10] sm:$0xf]
    %v856 = vld [vmem:[#allocation10 + $0x14] sm:$0xf]
    %v857 = vld [vmem:[#allocation10 + $0x18] sm:$0xf]
    %v858 = vld [vmem:[#allocation10 + $0x1c] sm:$0xf]
    %v859 = vld [vmem:[#allocation10 + $0x20] sm:$0xf]
    %v860 = vld [vmem:[#allocation10 + $0x24] sm:$0xf]
    %v861 = vld [vmem:[#allocation10 + $0x28] sm:$0xf]
    %v862 = vld [vmem:[#allocation10 + $0x2c] sm:$0xf]
    %v863 = vld [vmem:[#allocation10 + $0x30] sm:$0xf]
    %v864 = vld [vmem:[#allocation10 + $0x34] sm:$0xf]
    %v865 = vld [vmem:[#allocation10 + $0x38] sm:$0xf]
    %v866 = vld [vmem:[#allocation10 + $0x3c] sm:$0xf]
    %v867 = vld [vmem:[#allocation10 + $0x40] sm:$0xf]
    %v868 = vld [vmem:[#allocation10 + $0x44] sm:$0xf]
    %v869 = vld [vmem:[#allocation10 + $0x48] sm:$0xf]
    %v870 = vld [vmem:[#allocation10 + $0x4c] sm:$0xf]
    %v871 = vld [vmem:[#allocation10 + $0x50] sm:$0xf]
    %v872 = vld [vmem:[#allocation10 + $0x54] sm:$0xf]
    %v873 = vld [vmem:[#allocation10 + $0x58] sm:$0xf]
    %v874 = vld [vmem:[#allocation10 + $0x5c] sm:$0xf]
    %v875 = vld [vmem:[#allocation10 + $0x60] sm:$0xf]
    %v876 = vld [vmem:[#allocation10 + $0x64] sm:$0xf]
    %v877 = vld [vmem:[#allocation10 + $0x68] sm:$0xf]
    %v878 = vld [vmem:[#allocation10 + $0x6c] sm:$0xf]
    %v879 = vld [vmem:[#allocation10 + $0x70] sm:$0xf]
    %v880 = vld [vmem:[#allocation10 + $0x74] sm:$0xf]
    %v881 = vld [vmem:[#allocation10 + $0x78] sm:$0xf]
    %v882 = vld [vmem:[#allocation10 + $0x7c] sm:$0xf]
    %v883 = vld [vmem:[#allocation10 + $0x80] sm:$0xf]
    %v884 = vld [vmem:[#allocation10 + $0x84] sm:$0xf]
    %v885 = vld [vmem:[#allocation10 + $0x88] sm:$0xf]
    %v886 = vld [vmem:[#allocation10 + $0x8c] sm:$0xf]
    %v887 = vld [vmem:[#allocation10 + $0x90] sm:$0xf]
    %v888 = vld [vmem:[#allocation10 + $0x94] sm:$0xf]
    %v889 = vld [vmem:[#allocation10 + $0x98] sm:$0xf]
    %v890 = vld [vmem:[#allocation10 + $0x9c] sm:$0xf]
    %v891 = vld [vmem:[#allocation10 + $0xa0] sm:$0xf]
    %v892 = vld [vmem:[#allocation10 + $0xa4] sm:$0xf]
    %v893 = vld [vmem:[#allocation10 + $0xa8] sm:$0xf]
    %v894 = vld [vmem:[#allocation10 + $0xac] sm:$0xf]
    %v895 = vld [vmem:[#allocation10 + $0xb0] sm:$0xf]
    %v896 = vld [vmem:[#allocation10 + $0xb4] sm:$0xf]
    %v897 = vld [vmem:[#allocation10 + $0xb8] sm:$0xf]
    %v898 = vld [vmem:[#allocation10 + $0xbc] sm:$0xf]
    %v947 = vunpack.c.l.b16 %v851
    %v948 = vunpack.c.l.b16 %v852
    %v949 = vunpack.c.l.b16 %v853
    %v950 = vunpack.c.l.b16 %v854
    %v951 = vunpack.c.l.b16 %v855
    %v952 = vunpack.c.l.b16 %v856
    %v953 = vunpack.c.l.b16 %v857
    %v954 = vunpack.c.l.b16 %v858
    %v955 = vunpack.c.l.b16 %v859
    %v956 = vunpack.c.l.b16 %v860
    %v957 = vunpack.c.l.b16 %v861
    %v958 = vunpack.c.l.b16 %v862
    %v959 = vunpack.c.l.b16 %v863
    %v960 = vunpack.c.l.b16 %v864
    %v961 = vunpack.c.l.b16 %v865
    %v962 = vunpack.c.l.b16 %v866
    %v963 = vunpack.c.l.b16 %v867
    %v964 = vunpack.c.l.b16 %v868
    %v965 = vunpack.c.l.b16 %v869
    %v966 = vunpack.c.l.b16 %v870
    %v967 = vunpack.c.l.b16 %v871
    %v968 = vunpack.c.l.b16 %v872
    %v969 = vunpack.c.l.b16 %v873
    %v970 = vunpack.c.l.b16 %v874
    %v971 = vunpack.c.l.b16 %v875
    %v972 = vunpack.c.l.b16 %v876
    %v973 = vunpack.c.l.b16 %v877
    %v974 = vunpack.c.l.b16 %v878
    %v975 = vunpack.c.l.b16 %v879
    %v976 = vunpack.c.l.b16 %v880
    %v977 = vunpack.c.l.b16 %v881
    %v978 = vunpack.c.l.b16 %v882
    %v979 = vunpack.c.l.b16 %v883
    %v980 = vunpack.c.l.b16 %v884
    %v981 = vunpack.c.l.b16 %v885
    %v982 = vunpack.c.l.b16 %v886
    %v983 = vunpack.c.l.b16 %v887
    %v984 = vunpack.c.l.b16 %v888
    %v985 = vunpack.c.l.b16 %v889
    %v986 = vunpack.c.l.b16 %v890
    %v987 = vunpack.c.l.b16 %v891
    %v988 = vunpack.c.l.b16 %v892
    %v989 = vunpack.c.l.b16 %v893
    %v990 = vunpack.c.l.b16 %v894
    %v991 = vunpack.c.l.b16 %v895
    %v992 = vunpack.c.l.b16 %v896
    %v993 = vunpack.c.l.b16 %v897
    %v994 = vunpack.c.l.b16 %v898
    %v995 = vpack.c.b16 %v948, %v947
    %v996 = vpack.c.b16 %v950, %v949
    %v997 = vpack.c.b16 %v952, %v951
    %v998 = vpack.c.b16 %v954, %v953
    %v999 = vpack.c.b16 %v956, %v955
    %v1000 = vpack.c.b16 %v958, %v957
    %v1001 = vpack.c.b16 %v960, %v959
    %v1002 = vpack.c.b16 %v962, %v961
    %v1003 = vpack.c.b16 %v964, %v963
    %v1004 = vpack.c.b16 %v966, %v965
    %v1005 = vpack.c.b16 %v968, %v967
    %v1006 = vpack.c.b16 %v970, %v969
    %v1007 = vpack.c.b16 %v972, %v971
    %v1008 = vpack.c.b16 %v974, %v973
    %v1009 = vpack.c.b16 %v976, %v975
    %v1010 = vpack.c.b16 %v978, %v977
    %v1011 = vpack.c.b16 %v980, %v979
    %v1012 = vpack.c.b16 %v982, %v981
    %v1013 = vpack.c.b16 %v984, %v983
    %v1014 = vpack.c.b16 %v986, %v985
    %v1015 = vpack.c.b16 %v988, %v987
    %v1016 = vpack.c.b16 %v990, %v989
    %v1017 = vpack.c.b16 %v992, %v991
    %v1018 = vpack.c.b16 %v994, %v993
    %1043 = vmatprep.subr.bf16.mxu0 0
    %1044 = vmatpush1.bf16.msra.mxu0 %v995
    %1045 = vmatprep.subr.bf16.mxu0 0
    %1046 = vmatpush1.bf16.msra.mxu0 %v996
    %1047 = vmatprep.subr.bf16.mxu0 0
    %1048 = vmatpush1.bf16.msra.mxu0 %v997
    %1049 = vmatprep.subr.bf16.mxu0 0
    %1050 = vmatpush1.bf16.msra.mxu0 %v998
    %1051 = vmatprep.subr.bf16.mxu0 0
    %1052 = vmatpush1.bf16.msra.mxu0 %v999
    %1053 = vmatprep.subr.bf16.mxu0 0
    %1054 = vmatpush1.bf16.msra.mxu0 %v1000
    %1055 = vmatprep.subr.bf16.mxu0 0
    %1056 = vmatpush1.bf16.msra.mxu0 %v1001
    %1057 = vmatprep.subr.bf16.mxu0 0
    %1058 = vmatpush1.bf16.msra.mxu0 %v1002
    %1059 = vmatprep.subr.bf16.mxu0 0
    %1060 = vmatpush1.bf16.msra.mxu0 %v1003
    %1061 = vmatprep.subr.bf16.mxu0 0
    %1062 = vmatpush1.bf16.msra.mxu0 %v1004
    %1063 = vmatprep.subr.bf16.mxu0 0
    %1064 = vmatpush1.bf16.msra.mxu0 %v1005
    %1065 = vmatprep.subr.bf16.mxu0 0
    %1066 = vmatpush1.bf16.msra.mxu0 %v1006
    %1067 = vmatprep.subr.bf16.mxu0 0
    %1068 = vmatpush1.bf16.msra.mxu0 %v1007
    %1069 = vmatprep.subr.bf16.mxu0 0
    %1070 = vmatpush1.bf16.msra.mxu0 %v1008
    %1071 = vmatprep.subr.bf16.mxu0 0
    %1072 = vmatpush1.bf16.msra.mxu0 %v1009
    %1073 = vmatprep.subr.bf16.mxu0 0
    %1074 = vmatpush1.bf16.msra.mxu0 %v1010
    %1075 = vmatprep.mubr.bf16.mxu0 %v849
    %1076 = vmatmul.mubr.bf16.gmra.mrb[0].mxu0 %v848
    %v1077 = vpop.f32.mrb[0].mxu0
    %v1078 = vadd.f32 0.0, %v1077
    %v1079 = vpop.f32.mrb[0].mxu0
    %v1080 = vpop.f32.mrb[0].mxu0
    %v1081 = vpop.f32.mrb[0].mxu0
    %1082 = vdwg.mxu0
    %1083 = vmatprep.subr.bf16.mxu0 0
    %1084 = vmatpush1.bf16.msra.mxu0 %v1011
    %1085 = vmatprep.subr.bf16.mxu0 0
    %1086 = vmatpush1.bf16.msra.mxu0 %v1012
    %1087 = vmatprep.subr.bf16.mxu0 0
    %1088 = vmatpush1.bf16.msra.mxu0 %v1013
    %1089 = vmatprep.subr.bf16.mxu0 0
    %1090 = vmatpush1.bf16.msra.mxu0 %v1014
    %1091 = vmatprep.subr.bf16.mxu0 0
    %1092 = vmatpush1.bf16.msra.mxu0 %v1015
    %1093 = vmatprep.subr.bf16.mxu0 0
    %1094 = vmatpush1.bf16.msra.mxu0 %v1016
    %1095 = vmatprep.subr.bf16.mxu0 0
    %1096 = vmatpush1.bf16.msra.mxu0 %v1017
    %1097 = vmatprep.subr.bf16.mxu0 0
    %1098 = vmatpush1.bf16.msra.mxu0 %v1018
    %1099 = vmatprep.subr.bf16.mxu0 0
    %1100 = vmatpush1.bf16.msra.mxu0 0
    %1101 = vmatprep.subr.bf16.mxu0 0
    %1102 = vmatpush1.bf16.msra.mxu0 0
    %1103 = vmatprep.subr.bf16.mxu0 0
    %1104 = vmatpush1.bf16.msra.mxu0 0
    %1105 = vmatprep.subr.bf16.mxu0 0
    %1106 = vmatpush1.bf16.msra.mxu0 0
    %1107 = vmatprep.subr.bf16.mxu0 0
    %1108 = vmatpush1.bf16.msra.mxu0 0
    %1109 = vmatprep.subr.bf16.mxu0 0
    %1110 = vmatpush1.bf16.msra.mxu0 0
    %1111 = vmatprep.subr.bf16.mxu0 0
    %1112 = vmatpush1.bf16.msra.mxu0 0
    %1113 = vmatprep.subr.bf16.mxu0 0
    %1114 = vmatpush1.bf16.msra.mxu0 0
    %1115 = vmatprep.mubr.bf16.mxu0 0
    %1116 = vmatmul.mubr.bf16.gmra.mrb[0].mxu0 %v850
    %v1117 = vpop.f32.mrb[0].mxu0
    %v1118 = vadd.f32 %v1078, %v1117
    %v1119 = vpop.f32.mrb[0].mxu0
    %v1120 = vpop.f32.mrb[0].mxu0
    %v1121 = vpop.f32.mrb[0].mxu0
    %1122 = vdwg.mxu0
    %v1123 = vmax.f32 %v1118, 0.0
    %v1124 = vpack.c.bf16 %v1123, %v1123
    %1125 = vst [vmem:[#allocation11] sm:$0xf] %v1124
    // Predicated region
    $region54: #{tpu_custom_call.1} parent=1 // pred_check
      _
    $region55: #{tpu_custom_call.1} parent=1 // pred_check_branch
      %1127 = sbr.rel (0) target = $region57
    $region56: #{tpu_custom_call.1} parent=1 // pred_region
      %s1129 = ssub.s32 64, 64
      %1130 = vsyncadd [#allocation4], %s1129
      %s1132 = sshll.u32 [#allocation11], 4
      %s1133 = int_to_ptr.vmem [resolvable:$true] %s1132
      %1135 = dma.vmem_to_hbm [thread:$0]  %s1133, 64, %s8, [#allocation4]
    $region57: #{tpu_custom_call.1} parent=1 // pred_fallthru
      _
    // Predicated region
    $region58: #{tpu_custom_call.1} parent=1 // pred_check
      _
    $region59: #{tpu_custom_call.1} parent=1 // pred_check_branch
      %1137 = sbr.rel (0) target = $region61
    $region60: #{tpu_custom_call.1} parent=1 // pred_region
      %1138 = dma.done [#allocation4], 64
    $region61: #{tpu_custom_call.1} parent=1 // pred_fallthru
      _
    %1139 = vsyncpa [#allocation3], 1
    %1140 = vsyncpa [#allocation6], 1
    %1141 = vsyncpa [#allocation9], 1
    %1142 = vsyncpa [#allocation4], 1

</llo_original>
